<compile_context>
chip_gen: v6e
topology: v6e:2x2x1
jax: 0.10.0
libtpu: 0.0.40
codegen_flags: <defaults>
</compile_context>

<pallas_src>
import functools

import jax
import jax.numpy as jnp
from jax.experimental import pallas as pl
from jax.experimental.pallas import tpu as pltpu


def adv_loss_kernel(pred_ref, tgt_ref, kappa_ref, out_ref, acc_ref, *, inv_b):
    i = pl.program_id(0)

    @pl.when(i == 0)
    def _init():
        acc_ref[...] = jnp.zeros_like(acc_ref)

    pred = pred_ref[...]            # (C, TILE_B) f32, batch on lanes
    tgt = tgt_ref[...]              # (1, TILE_B) i32 (-1 marks padded columns)
    C, tb = pred.shape

    # one-hot mask via sublane (class-axis) iota vs broadcast target
    row = jax.lax.broadcasted_iota(jnp.int32, (C, tb), 0)
    mask = row == tgt                                            # (C, TILE_B)

    # real  = logit at the target class
    # other = max over non-target classes (target slot forced to -10000,
    #         matching the PyTorch "(1-tlab)*pred - tlab*10000" trick)
    real = jnp.sum(jnp.where(mask, pred, 0.0), axis=0, keepdims=True)
    other = jnp.max(jnp.where(mask, -10000.0, pred), axis=0, keepdims=True)

    kappa = kappa_ref[0]
    loss = jnp.maximum(other - real + kappa, 0.0)                # (1, TILE_B)
    loss = jnp.where(tgt >= 0, loss, 0.0)                        # drop padding

    acc_ref[...] += loss

    @pl.when(i == pl.num_programs(0) - 1)
    def _finalize():
        out_ref[0, 0] = jnp.sum(acc_ref[...]) * inv_b


def _choose_tile_b(B, C, budget_bytes=8 * 1024 * 1024):
    """Largest lane tile (multiple of 128) whose double-buffered working set
    (pred f32 + target i32) stays well under the scoped-VMEM defaults of
    v5e (16 MiB) and v7x (32 MiB scoped / 64 MiB physical)."""
    max_tile = budget_bytes // (2 * 4 * (C + 1))        # 2 buffers, 4 B/elem
    max_tile = max(128, (max_tile // 128) * 128)
    b_pad = ((B + 127) // 128) * 128
    return int(min(b_pad, max_tile, 4096))


def get_adv_loss(pred, target, kappa=0.0, *, tile_b=None):
    """pred: (B, C) float32, target: (B,) int, kappa: scalar."""
    pred = jnp.asarray(pred, jnp.float32)
    B, C = pred.shape
    if tile_b is None:
        tile_b = _choose_tile_b(B, C)
    n_tiles = pl.cdiv(B, tile_b)
    b_pad = n_tiles * tile_b

    # lane-dense layout: classes on sublanes, batch on lanes
    pred_t = jnp.pad(pred.T, ((0, 0), (0, b_pad - B)))                   # (C, b_pad)
    tgt = jnp.asarray(target, jnp.int32).reshape(1, B)
    tgt = jnp.pad(tgt, ((0, 0), (0, b_pad - B)), constant_values=-1)     # (1, b_pad)
    kappa_arr = jnp.asarray([kappa], dtype=jnp.float32)

    kernel = functools.partial(adv_loss_kernel, inv_b=1.0 / B)

    out = pl.pallas_call(
        kernel,
        out_shape=jax.ShapeDtypeStruct((1, 1), jnp.float32),
        grid=(n_tiles,),
        in_specs=[
            pl.BlockSpec((C, tile_b), lambda i: (0, i)),          # pred tile
            pl.BlockSpec((1, tile_b), lambda i: (0, i)),          # target tile
            pl.BlockSpec(memory_space=pltpu.MemorySpace.SMEM),    # kappa scalar
        ],
        out_specs=pl.BlockSpec(memory_space=pltpu.MemorySpace.SMEM),
        scratch_shapes=[pltpu.VMEM((1, tile_b), jnp.float32)],
        compiler_params=pltpu.CompilerParams(
            dimension_semantics=("arbitrary",)),
    )(pred_t, tgt, kappa_arr)
    return out[0, 0]


def _reference(pred, target, kappa=0.0):
    # pure-JAX reference mirroring the PyTorch forward
    C = pred.shape[1]
    tlab = jax.nn.one_hot(target, C, dtype=pred.dtype)
    real = jnp.sum(tlab * pred, axis=1)
    other = jnp.max((1.0 - tlab) * pred - tlab * 10000.0, axis=1)
    return jnp.mean(jnp.maximum(0.0, other - real + kappa))


if __name__ == "__main__":
    key = jax.random.PRNGKey(0)

    # small shapes consistent with the module: batch=8, num_class=16
    kp, kt = jax.random.split(key)
    pred = jax.random.normal(kp, (8, 16), dtype=jnp.float32)
    target = jax.random.randint(kt, (8,), 0, 16, dtype=jnp.int32)
    out = jax.block_until_ready(get_adv_loss(pred, target, kappa=0.0))
    ref = _reference(pred, target, kappa=0.0)
    assert jnp.allclose(out, ref, atol=1e-5, rtol=1e-5), (out, ref)

    # exercise the multi-tile grid + remainder masking path
    kp2, kt2 = jax.random.split(kt)
    pred2 = jax.random.normal(kp2, (300, 16), dtype=jnp.float32)
    target2 = jax.random.randint(kt2, (300,), 0, 16, dtype=jnp.int32)
    out2 = jax.block_until_ready(get_adv_loss(pred2, target2, kappa=0.1, tile_b=128))
    ref2 = _reference(pred2, target2, kappa=0.1)
    assert jnp.allclose(out2, ref2, atol=1e-5, rtol=1e-5), (out2, ref2)

    print("KERNEL_OK")
</pallas_src>

<mosaic_0001>
module attributes {stable_mosaic.version = 11 : i64} {
  func.func @adv_loss_kernel(%arg0: i32, %arg1: memref<16x128xf32, #tpu.memory_space<vmem>>, %arg2: memref<1x128xi32, #tpu.memory_space<vmem>>, %arg3: memref<1xf32, #tpu.memory_space<smem>>, %arg4: memref<1x1xf32, #tpu.memory_space<smem>>, %arg5: memref<1x128xf32, #tpu.memory_space<vmem>>) attributes {dimension_semantics = [#tpu.dimension_semantics<arbitrary>], iteration_bounds = array<i64: 1>, scalar_prefetch = 0 : i64, scratch_operands = 1 : i64, tpu.core_type = #tpu.core_type<tc>, window_params = [{transform_indices = @transform_0, window_bounds = array<i64: 16, 128>}, {transform_indices = @transform_1, window_bounds = array<i64: 1, 128>}, {transform_indices = @transform_2, window_bounds = array<i64: 1>}, {transform_indices = @transform_3, window_bounds = array<i64: 1, 1>}]} {
    %c0_i32 = arith.constant 0 : i32
    %0 = arith.cmpi eq, %arg0, %c0_i32 : i32
    %1 = arith.extui %0 : i1 to i32
    %c0_i32_0 = arith.constant 0 : i32
    %2 = arith.cmpi ne, %1, %c0_i32_0 : i32
    scf.if %2 {
      %cst_17 = arith.constant 0.000000e+00 : f32
      %32 = vector.broadcast %cst_17 : f32 to vector<1x128xf32>
      %c0_18 = arith.constant 0 : index
      %c0_19 = arith.constant 0 : index
      %33 = vector.load %arg5[%c0_18, %c0_19] : memref<1x128xf32, #tpu.memory_space<vmem>>, vector<1x128xf32>
      tpu.vector_store %arg5[%c0_18, %c0_19], %32 {strides = array<i32>} : memref<1x128xf32, #tpu.memory_space<vmem>>, vector<1x128xf32>,
    } else {
    }
    %c0 = arith.constant 0 : index
    %c0_1 = arith.constant 0 : index
    %3 = vector.load %arg1[%c0, %c0_1] : memref<16x128xf32, #tpu.memory_space<vmem>>, vector<16x128xf32>
    %c0_2 = arith.constant 0 : index
    %c0_3 = arith.constant 0 : index
    %4 = vector.load %arg2[%c0_2, %c0_3] : memref<1x128xi32, #tpu.memory_space<vmem>>, vector<1x128xi32>
    %5 = tpu.iota {dimensions = array<i32: 0>} : vector<16x128xi32>
    %6 = vector.broadcast %4 : vector<1x128xi32> to vector<16x128xi32>
    %7 = arith.cmpi eq, %5, %6 : vector<16x128xi32>
    %cst = arith.constant 0.000000e+00 : f32
    %8 = vector.broadcast %cst : f32 to vector<16x128xf32>
    %9 = arith.select %7, %3, %8 : vector<16x128xi1>, vector<16x128xf32>
    %cst_4 = arith.constant dense<0.000000e+00> : vector<128xf32>
    %10 = vector.multi_reduction <add>, %9, %cst_4 [0] : vector<16x128xf32> to vector<128xf32>
    %11 = vector.shape_cast %10 : vector<128xf32> to vector<1x128xf32>
    %cst_5 = arith.constant -1.000000e+04 : f32
    %12 = vector.broadcast %cst_5 : f32 to vector<16x128xf32>
    %13 = arith.select %7, %12, %3 : vector<16x128xi1>, vector<16x128xf32>
    %cst_6 = arith.constant dense<0xFF800000> : vector<128xf32>
    %14 = vector.multi_reduction <maximumf>, %13, %cst_6 [0] : vector<16x128xf32> to vector<128xf32>
    %15 = vector.shape_cast %14 : vector<128xf32> to vector<1x128xf32>
    %c0_7 = arith.constant 0 : index
    %16 = memref.load %arg3[%c0_7] : memref<1xf32, #tpu.memory_space<smem>>
    %17 = arith.subf %15, %11 : vector<1x128xf32>
    %18 = vector.broadcast %16 : f32 to vector<1x128xf32>
    %19 = arith.addf %17, %18 : vector<1x128xf32>
    %cst_8 = arith.constant 0.000000e+00 : f32
    %20 = vector.broadcast %cst_8 : f32 to vector<1x128xf32>
    %21 = arith.maximumf %19, %20 : vector<1x128xf32>
    %c0_i32_9 = arith.constant 0 : i32
    %22 = vector.broadcast %c0_i32_9 : i32 to vector<1x128xi32>
    %23 = arith.cmpi sge, %4, %22 : vector<1x128xi32>
    %cst_10 = arith.constant 0.000000e+00 : f32
    %24 = vector.broadcast %cst_10 : f32 to vector<1x128xf32>
    %25 = arith.select %23, %21, %24 : vector<1x128xi1>, vector<1x128xf32>
    %c0_11 = arith.constant 0 : index
    %c0_12 = arith.constant 0 : index
    %26 = vector.load %arg5[%c0_11, %c0_12] : memref<1x128xf32, #tpu.memory_space<vmem>>, vector<1x128xf32>
    %27 = arith.addf %26, %25 : vector<1x128xf32>
    %c0_13 = arith.constant 0 : index
    %c0_14 = arith.constant 0 : index
    %28 = vector.load %arg5[%c0_13, %c0_14] : memref<1x128xf32, #tpu.memory_space<vmem>>, vector<1x128xf32>
    tpu.vector_store %arg5[%c0_13, %c0_14], %27 {strides = array<i32>} : memref<1x128xf32, #tpu.memory_space<vmem>>, vector<1x128xf32>,
    %c0_i32_15 = arith.constant 0 : i32
    %29 = arith.cmpi eq, %arg0, %c0_i32_15 : i32
    %30 = arith.extui %29 : i1 to i32
    %c0_i32_16 = arith.constant 0 : i32
    %31 = arith.cmpi ne, %30, %c0_i32_16 : i32
    scf.if %31 {
      %c0_17 = arith.constant 0 : index
      %c0_18 = arith.constant 0 : index
      %32 = vector.load %arg5[%c0_17, %c0_18] : memref<1x128xf32, #tpu.memory_space<vmem>>, vector<1x128xf32>
      %33 = vector.shape_cast %32 : vector<1x128xf32> to vector<1x1x128xf32>
      %cst_19 = arith.constant dense<0.000000e+00> : vector<1xf32>
      %34 = vector.multi_reduction <add>, %33, %cst_19 [1, 2] : vector<1x1x128xf32> to vector<1xf32>
      %35 = vector.shape_cast %34 : vector<1xf32> to vector<1x1x1xf32>
      %36 = vector.extract %35[0, 0, 0] : f32 from vector<1x1x1xf32>
      %cst_20 = arith.constant 1.250000e-01 : f32
      %37 = arith.mulf %36, %cst_20 : f32
      %c0_21 = arith.constant 0 : index
      %c0_22 = arith.constant 0 : index
      %38 = memref.load %arg4[%c0_21, %c0_22] : memref<1x1xf32, #tpu.memory_space<smem>>
      memref.store %37, %arg4[%c0_21, %c0_22] : memref<1x1xf32, #tpu.memory_space<smem>>
    } else {
    }
    return
  }
  func.func @transform_0(%arg0: i32) -> (i32, i32) {
    %c0_i32 = arith.constant 0 : i32
    %c0_i32_0 = arith.constant 0 : i32
    return %c0_i32, %arg0 : i32, i32
  }
  func.func @transform_1(%arg0: i32) -> (i32, i32) {
    %c0_i32 = arith.constant 0 : i32
    %c0_i32_0 = arith.constant 0 : i32
    return %c0_i32, %arg0 : i32, i32
  }
  func.func @transform_2(%arg0: i32) -> i32 {
    %c0_i32 = arith.constant 0 : i32
    %c0_i32_0 = arith.constant 0 : i32
    return %c0_i32 : i32
  }
  func.func @transform_3(%arg0: i32) -> (i32, i32) {
    %c0_i32 = arith.constant 0 : i32
    %c0_i32_0 = arith.constant 0 : i32
    %c0_i32_1 = arith.constant 0 : i32
    return %c0_i32, %c0_i32_0 : i32, i32
  }
}

</mosaic_0001>

<llo_original>
// kernel: tpu_custom_call.1
$region0: #{tpu_custom_call.1}
  #allocation0 [shape = 'u32[]', space=smem, size = 0x4, offset = 0x4, fixed_abs, tag = 'smem constant byte address 0x4 - core index']
  #allocation1 [shape = 'u32[144,128]{1,0:T(1,128)}', space=vmem, size = 0x12000, scoped, tag = 'internal scratch']
  #allocation2 [shape = 'f32[1,128]{1,0:T(1,128)}', space=vmem, size = 0x200, scoped, tag = 'scratch operand']
  #allocation3 [shape = 'f32[1]{0:T(128)S(6)}', space=smem, size = 0x200, scoped, tag = 'scoped memory for tpu_custom_call.1']
  %s0 = inlined_call_operand.hbm [shape: f32[16,128], index: 0, kind: input, shape index: {}]
  %s1 = inlined_call_operand.vmem [shape: s32[1,128], index: 1, kind: input, shape index: {}]
  %s2 = inlined_call_operand.<no memory space> [shape: f32[1], index: 2, kind: input, shape index: {}]
  %s3 = inlined_call_operand.hbm [shape: f32[1,1], index: 3, kind: output, shape index: {}]
  %s4 = sld [smem:[#allocation0]]
  $region34: #{tpu_custom_call.1} parent=0
    _
  %s6 = ssub.s32 1, %s4
  %s7 = scalar_select 0, %s6, %s4
  %8 = sst [smem:[#allocation3]] %s2
  $region1: #{tpu_custom_call.1} parent=0
    #allocation4 [shape = 'u8[8192]{0}', space=vmem, size = 0x2000, scoped, tag = 'input window, operand 0, single buffered']
    #allocation5 [shape = 's32[1]{0}', space=sflag, size = 0x4, scoped, tag = 'scoped memory for tpu_custom_call.1']
    #allocation6 [shape = 's32[1]{0}', space=sflag, size = 0x4, scoped, tag = 'scoped memory for tpu_custom_call.1']
    #allocation7 [shape = 'u8[512]{0}', space=smem, size = 0x200, scoped, tag = 'output window, operand 0, single buffered']
    %9 = vsyncpa [#allocation5], 0
    %10 = vsyncpa [#allocation6], 0
    // Predicated region
    $region2: #{tpu_custom_call.1} parent=1 // pred_check
      _
    $region3: #{tpu_custom_call.1} parent=1 // pred_check_branch
      %12 = sbr.rel (0) target = $region5
    $region4: #{tpu_custom_call.1} parent=1 // pred_region
      %s14 = ssub.s32 256, 256
      %15 = vsyncadd [#allocation5], %s14
      %s16 = sshll.u32 [#allocation4], 4
      %s17 = int_to_ptr.vmem [resolvable:$true] %s16
      %22 = dma.hbm_to_vmem [thread:$0]  %s0, 256, %s17, [#allocation5], 128, 128, 8
    $region5: #{tpu_custom_call.1} parent=1 // pred_fallthru
      _
    // Predicated region
    $region6: #{tpu_custom_call.1} parent=1 // pred_check
      _
    $region7: #{tpu_custom_call.1} parent=1 // pred_check_branch
      %24 = sbr.rel (0) target = $region9
    $region8: #{tpu_custom_call.1} parent=1 // pred_region
      _
    $region9: #{tpu_custom_call.1} parent=1 // pred_fallthru
      _
    // Predicated region
    $region10: #{tpu_custom_call.1} parent=1 // pred_check
      _
    $region11: #{tpu_custom_call.1} parent=1 // pred_check_branch
      %26 = sbr.rel (0) target = $region13
    $region12: #{tpu_custom_call.1} parent=1 // pred_region
      _
    $region13: #{tpu_custom_call.1} parent=1 // pred_fallthru
      _
    // Predicated region
    $region14: #{tpu_custom_call.1} parent=1 // pred_check
      _
    $region15: #{tpu_custom_call.1} parent=1 // pred_check_branch
      %28 = sbr.rel (0) target = $region17
    $region16: #{tpu_custom_call.1} parent=1 // pred_region
      %29 = dma.done [#allocation5], 256
    $region17: #{tpu_custom_call.1} parent=1 // pred_fallthru
      _
    %p30 = scmp.eq.s32.totalorder 0, 0
    // Predicated region
    $region18: #{tpu_custom_call.1} parent=1 // pred_check
      %p31 = pneg %p30
    $region19: #{tpu_custom_call.1} parent=1 // pred_check_branch
      %33 = sbr.rel (%p31) target = $region21
    $region20: #{tpu_custom_call.1} parent=1 // pred_region
      %34 = vst [vmem:[#allocation2] sm:$0x1] 0.0
    $region21: #{tpu_custom_call.1} parent=1 // pred_fallthru
      _
    %v35 = vld [vmem:[#allocation4] sm:$0xff]
    %v36 = vld [vmem:[#allocation4 + $0x8] sm:$0xff]
    %v37 = vld [vmem:[%s1] sm:$0x1]
    %v38 = vlaneseq
    %v39 = vshrl.u32 %v38, 7
    %v40 = vadd.s32 %v39, 8
    %v41 = vlaneseq
    %v42 = vshrl.u32 %v41, 7
    %v43 = vsub.s32 0, %v42
    %v44 = vrot.slane %v37, %v43
    %vm45 = vcmp.eq.s32.totalorder %v39, %v44
    %vm46 = vcmp.eq.s32.totalorder %v40, %v44
    %v47 = vsel %vm45, %v35, 0.0
    %v48 = vsel %vm46, %v36, 0.0
    %v49 = vadd.f32 %v47, %v48
    %v50 = vrot.slane %v49, 4
    %v51 = vadd.f32 %v49, %v50
    %v52 = vrot.slane %v51, 2
    %v53 = vadd.f32 %v51, %v52
    %v54 = vrot.slane %v53, 1
    %v55 = vadd.f32 %v53, %v54
    %v56 = vsel %vm45, -10000.0, %v35
    %v57 = vsel %vm46, -10000.0, %v36
    %v58 = vmax.f32 %v56, %v57
    %v59 = vrot.slane %v58, 4
    %v60 = vmax.f32 %v58, %v59
    %v61 = vrot.slane %v60, 2
    %v62 = vmax.f32 %v60, %v61
    %v63 = vrot.slane %v62, 1
    %v64 = vmax.f32 %v62, %v63
    %s65 = sld [smem:[#allocation3]]
    %v66 = vsub.f32 %v64, %v55
    %v67 = vstv %s65
    %v68 = vadd.f32 %v66, %v67
    %v69 = vmax.f32 %v68, 0.0
    %vm70 = vcmp.ge.s32.totalorder %v37, 0
    %v71 = vsel %vm70, %v69, 0.0
    %v72 = vld [vmem:[#allocation2] sm:$0x1]
    %v73 = vadd.f32 %v72, %v71
    %74 = vst [vmem:[#allocation2] sm:$0x1] %v73
    // Predicated region
    $region22: #{tpu_custom_call.1} parent=1 // pred_check
      %p75 = pneg %p30
    $region23: #{tpu_custom_call.1} parent=1 // pred_check_branch
      %77 = sbr.rel (%p75) target = $region25
    $region24: #{tpu_custom_call.1} parent=1 // pred_region
      %v78 = vld [vmem:[#allocation2] sm:$0x1]
      %vm79 = vcmask 1040384
      %v80 = vsel %vm79, %v78, 0.0
      %81 = vadd.xlane.f32.xlu0 %v80
      %v82 = vpop.xlane.xlu0 %81
      %v83 = vrot.slane %v82, 4
      %v84 = vadd.f32 %v82, %v83
      %v85 = vrot.slane %v84, 2
      %v86 = vadd.f32 %v84, %v85
      %v87 = vrot.slane %v86, 1
      %v88 = vadd.f32 %v86, %v87
      %s89 = vtos %v88
      %s90 = smul.f32 %s89, 0.125
      %s91 = scalar_lea.smem [#allocation7], 0
      %92 = sst [smem:[%s91]] %s90
    $region25: #{tpu_custom_call.1} parent=1 // pred_fallthru
      _
    // Predicated region
    $region26: #{tpu_custom_call.1} parent=1 // pred_check
      _
    $region27: #{tpu_custom_call.1} parent=1 // pred_check_branch
      %94 = sbr.rel (0) target = $region29
    $region28: #{tpu_custom_call.1} parent=1 // pred_region
      %s96 = ssub.s32 16, 16
      %97 = vsyncadd [#allocation6], %s96
      %100 = dma.smem_to_hbm [#allocation7], 16, %s3, [#allocation6]
    $region29: #{tpu_custom_call.1} parent=1 // pred_fallthru
      _
    // Predicated region
    $region30: #{tpu_custom_call.1} parent=1 // pred_check
      _
    $region31: #{tpu_custom_call.1} parent=1 // pred_check_branch
      %102 = sbr.rel (0) target = $region33
    $region32: #{tpu_custom_call.1} parent=1 // pred_region
      %103 = dma.done [#allocation6], 16
    $region33: #{tpu_custom_call.1} parent=1 // pred_fallthru
      _
    %104 = sfence
    %105 = vsyncpa [#allocation5], 1
    %106 = vsyncpa [#allocation6], 1

</llo_original>
